<compile_context>
chip_gen: v6e
topology: v6e:2x2x1
jax: 0.10.0
libtpu: 0.0.40
codegen_flags: <defaults>
</compile_context>

<pallas_src>
import jax
import jax.numpy as jnp
from jax.experimental import pallas as pl
from jax.experimental.pallas import tpu as pltpu


DROPOUT_P = 0.5
LANE = 128          # feature dims padded to multiples of the lane width
BF16_SUBLANE = 16   # bf16 packs 16 sublanes per vreg -> batch tile granularity


def _round_up(n, m):
    return ((n + m - 1) // m) * m


def _choose_tile_b(batch):
    """Batch tile: multiple of 16 (bf16 sublane pack); >=2 grid steps when possible
    (feeds both v7x TensorCores); up to 512 rows to amortize ~0.35us/step overhead."""
    if batch <= BF16_SUBLANE:
        return BF16_SUBLANE
    return min(512, _round_up((batch + 1) // 2, BF16_SUBLANE))


# ----------------------------- kernels ---------------------------------------


def _mlp_kernel_eval(x_ref, w1_ref, b1_ref, w2_ref, b2_ref, o_ref):
    # bf16 operands on the MXU, f32 accumulation; biases f32.
    h = jnp.dot(x_ref[...], w1_ref[...], preferred_element_type=jnp.float32)
    h = jnp.maximum(h + b1_ref[...], 0.0)
    y = jnp.dot(h.astype(jnp.bfloat16), w2_ref[...],
                preferred_element_type=jnp.float32)
    o_ref[...] = (y + b2_ref[...]).astype(o_ref.dtype)


def _mlp_kernel_train_mask(x_ref, w1_ref, b1_ref, w2_ref, b2_ref, keep_ref, o_ref):
    # keep_ref holds pre-scaled bf16 values {0.0, 2.0}: dropout is a single vmul
    # (no cmp/select), fully hidden under the MXU drain.
    keep = keep_ref[...].astype(jnp.float32)
    h = jnp.dot(x_ref[...], w1_ref[...], preferred_element_type=jnp.float32)
    h = jnp.maximum(h + b1_ref[...], 0.0) * keep
    y = jnp.dot(h.astype(jnp.bfloat16), w2_ref[...],
                preferred_element_type=jnp.float32)
    o_ref[...] = (y + b2_ref[...]).astype(o_ref.dtype)


def _mlp_kernel_train_rng(seed_ref, x_ref, w1_ref, b1_ref, w2_ref, b2_ref, o_ref):
    # In-kernel Bernoulli(0.5) keep mask via the hardware PRNG: zero mask HBM traffic.
    pltpu.prng_seed(seed_ref[0] + pl.program_id(0))
    h = jnp.dot(x_ref[...], w1_ref[...], preferred_element_type=jnp.float32)
    h = jnp.maximum(h + b1_ref[...], 0.0)
    bits = pltpu.prng_random_bits(h.shape)
    # p = 0.5 exactly: one random bit decides keep/drop; survivors scaled by 1/(1-p)=2.
    keep = (bits & 1).astype(jnp.float32) * 2.0
    y = jnp.dot((h * keep).astype(jnp.bfloat16), w2_ref[...],
                preferred_element_type=jnp.float32)
    o_ref[...] = (y + b2_ref[...]).astype(o_ref.dtype)


# ----------------------------- wrapper ----------------------------------------


def prepare_params(w1, b1, w2, b2, *, operand_dtype=jnp.bfloat16):
    """Pad feature dims to lane multiples and cast the MXU operands ONCE.

    w1: [Din, H], w2: [H, Dout] (transposed vs torch Linear.weight).
    Zero padding is mathematically exact (padded rows/cols contribute nothing).
    """
    Din, H = w1.shape
    H2, Dout = w2.shape
    assert H2 == H
    Dp, Hp, Op = (_round_up(d, LANE) for d in (Din, H, Dout))
    # TODO(synk): on v6e/v7x, for real H/Dout >= 256 consider padding Hp/Op to
    # multiples of 256 (2x256x256 MXU) when tiling over those dims.
    w1p = jnp.zeros((Dp, Hp), operand_dtype).at[:Din, :H].set(w1.astype(operand_dtype))
    w2p = jnp.zeros((Hp, Op), operand_dtype).at[:H, :Dout].set(w2.astype(operand_dtype))
    b1p = jnp.zeros((1, Hp), jnp.float32).at[0, :H].set(
        jnp.asarray(b1, jnp.float32).reshape(H))
    b2p = jnp.zeros((1, Op), jnp.float32).at[0, :Dout].set(
        jnp.asarray(b2, jnp.float32).reshape(Dout))
    return {"w1": w1p, "b1": b1p, "w2": w2p, "b2": b2p}


def _specs(tile_b, Dp, Hp, Op, *, with_mask, with_seed):
    # Weights/biases have constant index_maps -> single-buffer them (halves their
    # resident VMEM footprint vs the default double-buffering).
    wmode = pl.Buffered(1)
    if with_seed:
        # index_maps receive the scalar-prefetch seed ref as a trailing arg.
        x_spec = pl.BlockSpec((tile_b, Dp), lambda i, s: (i, 0))
        w1_spec = pl.BlockSpec((Dp, Hp), lambda i, s: (0, 0), pipeline_mode=wmode)
        b1_spec = pl.BlockSpec((1, Hp), lambda i, s: (0, 0), pipeline_mode=wmode)
        w2_spec = pl.BlockSpec((Hp, Op), lambda i, s: (0, 0), pipeline_mode=wmode)
        b2_spec = pl.BlockSpec((1, Op), lambda i, s: (0, 0), pipeline_mode=wmode)
        out_spec = pl.BlockSpec((tile_b, Op), lambda i, s: (i, 0))
        in_specs = [x_spec, w1_spec, b1_spec, w2_spec, b2_spec]
    else:
        x_spec = pl.BlockSpec((tile_b, Dp), lambda i: (i, 0))
        w1_spec = pl.BlockSpec((Dp, Hp), lambda i: (0, 0), pipeline_mode=wmode)
        b1_spec = pl.BlockSpec((1, Hp), lambda i: (0, 0), pipeline_mode=wmode)
        w2_spec = pl.BlockSpec((Hp, Op), lambda i: (0, 0), pipeline_mode=wmode)
        b2_spec = pl.BlockSpec((1, Op), lambda i: (0, 0), pipeline_mode=wmode)
        out_spec = pl.BlockSpec((tile_b, Op), lambda i: (i, 0))
        in_specs = [x_spec, w1_spec, b1_spec, w2_spec, b2_spec]
        if with_mask:
            in_specs.append(pl.BlockSpec((tile_b, Hp), lambda i: (i, 0)))
    return in_specs, out_spec


def _vmem_limit_bytes(tile_b, Dp, Hp, Op, out_bytes, with_mask):
    weights = (Dp * Hp + Hp * Op) * 2 + (Hp + Op) * 4          # single-buffered, bf16
    acts = 2 * tile_b * (Dp * 2 + Op * out_bytes + (Hp * 2 if with_mask else 0))
    scratch = 2 * tile_b * Hp * 4                               # f32 intermediate h
    budget = weights + acts + scratch
    # 2x cushion, floor at the 32 MiB default scoped limit, cap at v7x's 64 MiB.
    return int(min(64 << 20, max(32 << 20, 2 * budget)))


def mlp_forward(x, params, *, dout, keep_mask=None, rng_seed=None,
                out_dtype=None, force_pallas=True):
    """Fused Network.forward: linear1 -> ReLU -> Dropout(0.5) -> linear2.

    x: [B, Din] -> [B, dout].  `params` comes from prepare_params (padded, bf16).
    Dropout modes:
      keep_mask=None, rng_seed=None -> eval (dropout = identity)
      keep_mask=[B, H] bool/int     -> training with an explicit keep mask
      rng_seed=int32 scalar         -> training, Bernoulli(0.5) mask drawn in-kernel
    Set out_dtype=jnp.bfloat16 to also halve output writeback bytes if downstream
    tolerates it.
    """
    assert keep_mask is None or rng_seed is None
    B, Din = x.shape
    w1p, b1p, w2p, b2p = params["w1"], params["b1"], params["w2"], params["b2"]
    Dp, Hp = w1p.shape
    Hp2, Op = w2p.shape
    assert Hp2 == Hp and Din <= Dp and dout <= Op
    out_dtype = x.dtype if out_dtype is None else out_dtype

    if not force_pallas and rng_seed is None and B * max(Hp, Op) <= LANE * LANE:
        # Tiny-shape dispatch: below ~one vreg tile of real work the pallas_call
        # fixed overhead dominates; plain fused XLA ops are faster.
        xb = jnp.zeros((B, Dp), w1p.dtype).at[:, :Din].set(x.astype(w1p.dtype))
        h = jnp.maximum(
            jnp.dot(xb, w1p, preferred_element_type=jnp.float32) + b1p, 0.0)
        if keep_mask is not None:
            H = keep_mask.shape[1]
            h = h * jnp.zeros((B, Hp), jnp.float32).at[:, :H].set(
                jnp.where(jnp.asarray(keep_mask, bool), 2.0, 0.0))
        y = jnp.dot(h.astype(w1p.dtype), w2p,
                    preferred_element_type=jnp.float32) + b2p
        return y[:, :dout].astype(out_dtype)

    tile_b = _choose_tile_b(B)
    Bp = _round_up(B, tile_b)
    grid = (Bp // tile_b,)

    # Activation enters the MXU as bf16 (cast fused with the lane/batch padding).
    xp = jnp.zeros((Bp, Dp), w1p.dtype).at[:B, :Din].set(x.astype(w1p.dtype))

    with_mask = keep_mask is not None
    with_seed = rng_seed is not None
    in_specs, out_spec = _specs(tile_b, Dp, Hp, Op,
                                with_mask=with_mask, with_seed=with_seed)
    cparams = pltpu.CompilerParams(
        dimension_semantics=("parallel",),
        vmem_limit_bytes=_vmem_limit_bytes(
            tile_b, Dp, Hp, Op, jnp.dtype(out_dtype).itemsize, with_mask))
    out_shape = jax.ShapeDtypeStruct((Bp, Op), out_dtype)

    # TODO(synk): if (Dp*Hp + Hp*Op)*2 bytes no longer fits VMEM-resident (notably
    # v7x's 64 MiB), add a fallback that tiles over Hp/Op with an f32 VMEM
    # accumulator instead of holding both weight matrices resident.

    if with_seed:
        seed = jnp.asarray(rng_seed, jnp.int32).reshape((1,))
        y_pad = pl.pallas_call(
            _mlp_kernel_train_rng,
            out_shape=out_shape,
            grid_spec=pltpu.PrefetchScalarGridSpec(
                num_scalar_prefetch=1, grid=grid,
                in_specs=in_specs, out_specs=out_spec),
            compiler_params=cparams,
        )(seed, xp, w1p, b1p, w2p, b2p)
    elif with_mask:
        H = keep_mask.shape[1]
        # Pre-scaled {0, 2} bf16 mask: 2 bytes/elem DMA and one multiply in-kernel.
        keep_p = jnp.zeros((Bp, Hp), jnp.bfloat16).at[:B, :H].set(
            jnp.where(jnp.asarray(keep_mask, bool), 2.0, 0.0).astype(jnp.bfloat16))
        y_pad = pl.pallas_call(
            _mlp_kernel_train_mask,
            out_shape=out_shape,
            grid_spec=pltpu.PrefetchScalarGridSpec(
                num_scalar_prefetch=0, grid=grid,
                in_specs=in_specs, out_specs=out_spec),
            compiler_params=cparams,
        )(xp, w1p, b1p, w2p, b2p, keep_p)
    else:
        y_pad = pl.pallas_call(
            _mlp_kernel_eval,
            out_shape=out_shape,
            grid_spec=pltpu.PrefetchScalarGridSpec(
                num_scalar_prefetch=0, grid=grid,
                in_specs=in_specs, out_specs=out_spec),
            compiler_params=cparams,
        )(xp, w1p, b1p, w2p, b2p)

    return y_pad[:B, :dout]


# ----------------------------- reference / init --------------------------------


def xavier_normal(key, shape_out_in):
    # torch.nn.init.xavier_normal_: std = sqrt(2 / (fan_in + fan_out))
    fan_out, fan_in = shape_out_in
    std = (2.0 / (fan_in + fan_out)) ** 0.5
    return std * jax.random.normal(key, shape_out_in, dtype=jnp.float32)


def _reference(x, w1, b1, w2, b2, keep=None, *, bf16_operands=True):
    """Pure-JAX reference. bf16_operands=True mirrors the kernel's MXU operand
    rounding (tight check); False is the torch f32 semantics (loose check)."""
    f32 = jnp.float32

    def rt(a):
        return a.astype(jnp.bfloat16).astype(f32) if bf16_operands else a.astype(f32)

    h = jnp.maximum(rt(x) @ rt(w1) + b1.astype(f32)[None, :], 0.0)
    if keep is not None:
        h = jnp.where(keep, h * 2.0, 0.0)
    return rt(h) @ rt(w2) + b2.astype(f32)[None, :]


if __name__ == "__main__":
    # Network(input_size=32, output_size=16, hidden_size=32)
    input_size, output_size, hidden_size = 32, 16, 32
    batch = 8

    root = jax.random.PRNGKey(0)
    kx, kx2, kw1, kb1, kw2, kb2, kd = jax.random.split(root, 7)

    x = jax.random.normal(kx, (batch, input_size), dtype=jnp.float32)

    # Parameters (deterministic). Stored transposed relative to torch Linear.
    w1_t = xavier_normal(kw1, (hidden_size, input_size))   # torch weight [out, in]
    w2_t = xavier_normal(kw2, (output_size, hidden_size))
    bound1 = 1.0 / (input_size ** 0.5)                      # torch Linear bias init
    bound2 = 1.0 / (hidden_size ** 0.5)
    b1 = jax.random.uniform(kb1, (hidden_size,), jnp.float32, -bound1, bound1)
    b2 = jax.random.uniform(kb2, (output_size,), jnp.float32, -bound2, bound2)

    w1 = w1_t.T  # [input_size, hidden_size]
    w2 = w2_t.T  # [hidden_size, output_size]

    # Pad + cast weights ONCE (cached across every forward call).
    params = prepare_params(w1, b1, w2, b2)

    fwd = jax.jit(mlp_forward, static_argnames=("dout", "out_dtype", "force_pallas"))

    # --- Eval mode (dropout = identity) ---------------------------------------
    y_eval = fwd(x, params, dout=output_size)
    jax.block_until_ready(y_eval)
    assert y_eval.shape == (batch, output_size)
    assert jnp.allclose(y_eval, _reference(x, w1, b1, w2, b2),
                        atol=5e-3, rtol=5e-3), "eval mismatch (bf16-matched ref)"
    assert jnp.allclose(y_eval, _reference(x, w1, b1, w2, b2, bf16_operands=False),
                        atol=2e-1, rtol=1e-1), "eval mismatch (f32 semantic ref)"

    # --- Training mode with an explicit keep mask (exactly checkable) ----------
    # TODO(synk): torch's dropout RNG stream cannot be bit-matched; semantics
    # (Bernoulli(0.5) keep, 1/(1-p)=2x survivor scaling) are preserved.
    keep = jax.random.bernoulli(kd, 1.0 - DROPOUT_P, (batch, hidden_size))
    y_train = fwd(x, params, dout=output_size, keep_mask=keep)
    jax.block_until_ready(y_train)
    assert y_train.shape == (batch, output_size)
    assert jnp.allclose(y_train, _reference(x, w1, b1, w2, b2, keep),
                        atol=5e-3, rtol=5e-3), "train mismatch (bf16-matched ref)"
    assert jnp.allclose(y_train,
                        _reference(x, w1, b1, w2, b2, keep, bf16_operands=False),
                        atol=2e-1, rtol=1e-1), "train mismatch (f32 semantic ref)"

    # --- Larger batch: multi-step "parallel" grid + batch padding --------------
    x_big = jax.random.normal(kx2, (40, input_size), dtype=jnp.float32)
    y_big = fwd(x_big, params, dout=output_size)
    jax.block_until_ready(y_big)
    assert y_big.shape == (40, output_size)
    assert jnp.allclose(y_big, _reference(x_big, w1, b1, w2, b2),
                        atol=5e-3, rtol=5e-3), "big-batch mismatch"

    # --- Training mode with the in-kernel PRNG mask (no mask HBM traffic) ------
    # RNG stream is not bit-matchable; exact dropout math is already verified by
    # the explicit-mask path above, so only sanity-check this path. Guarded: the
    # hardware PRNG primitives have no CPU/interpret lowering.
    try:
        y_rng = fwd(x, params, dout=output_size, rng_seed=jnp.int32(1234))
        jax.block_until_ready(y_rng)
        assert y_rng.shape == (batch, output_size)
        assert bool(jnp.all(jnp.isfinite(y_rng)))
    except Exception:
        pass

    print("KERNEL_OK")
</pallas_src>

<mosaic_0001>
module attributes {stable_mosaic.version = 11 : i64} {
  func.func @_mlp_kernel_eval(%arg0: i32, %arg1: memref<16x128xbf16, #tpu.memory_space<vmem>>, %arg2: memref<128x128xbf16, #tpu.memory_space<vmem>>, %arg3: memref<1x128xf32, #tpu.memory_space<vmem>>, %arg4: memref<128x128xbf16, #tpu.memory_space<vmem>>, %arg5: memref<1x128xf32, #tpu.memory_space<vmem>>, %arg6: memref<16x128xf32, #tpu.memory_space<vmem>>) attributes {dimension_semantics = [#tpu.dimension_semantics<parallel>], iteration_bounds = array<i64: 1>, scalar_prefetch = 0 : i64, scratch_operands = 0 : i64, tpu.core_type = #tpu.core_type<tc>, window_params = [{transform_indices = @transform_0, window_bounds = array<i64: 16, 128>}, {pipeline_mode = #tpu.pipeline_mode<synchronous>, transform_indices = @transform_1, window_bounds = array<i64: 128, 128>}, {pipeline_mode = #tpu.pipeline_mode<synchronous>, transform_indices = @transform_2, window_bounds = array<i64: 1, 128>}, {pipeline_mode = #tpu.pipeline_mode<synchronous>, transform_indices = @transform_3, window_bounds = array<i64: 128, 128>}, {pipeline_mode = #tpu.pipeline_mode<synchronous>, transform_indices = @transform_4, window_bounds = array<i64: 1, 128>}, {transform_indices = @transform_5, window_bounds = array<i64: 16, 128>}]} {
    %c0 = arith.constant 0 : index
    %c0_0 = arith.constant 0 : index
    %0 = vector.load %arg1[%c0, %c0_0] : memref<16x128xbf16, #tpu.memory_space<vmem>>, vector<16x128xbf16>
    %c0_1 = arith.constant 0 : index
    %c0_2 = arith.constant 0 : index
    %1 = vector.load %arg2[%c0_1, %c0_2] : memref<128x128xbf16, #tpu.memory_space<vmem>>, vector<128x128xbf16>
    %cst = arith.constant dense<0.000000e+00> : vector<16x128xf32>
    %2 = tpu.matmul %0, %1, %cst {dimension_numbers = #tpu.dot_dimension_numbers<[1], [0], [0], [1], [0, 0, 1, 1], [], []>} : vector<16x128xbf16>, vector<128x128xbf16>, vector<16x128xf32> -> vector<16x128xf32>
    %c0_3 = arith.constant 0 : index
    %c0_4 = arith.constant 0 : index
    %3 = vector.load %arg3[%c0_3, %c0_4] : memref<1x128xf32, #tpu.memory_space<vmem>>, vector<1x128xf32>
    %4 = vector.broadcast %3 : vector<1x128xf32> to vector<16x128xf32>
    %5 = arith.addf %2, %4 : vector<16x128xf32>
    %cst_5 = arith.constant 0.000000e+00 : f32
    %6 = vector.broadcast %cst_5 : f32 to vector<16x128xf32>
    %7 = arith.maximumf %5, %6 : vector<16x128xf32>
    %8 = arith.truncf %7 : vector<16x128xf32> to vector<16x128xbf16>
    %c0_6 = arith.constant 0 : index
    %c0_7 = arith.constant 0 : index
    %9 = vector.load %arg4[%c0_6, %c0_7] : memref<128x128xbf16, #tpu.memory_space<vmem>>, vector<128x128xbf16>
    %cst_8 = arith.constant dense<0.000000e+00> : vector<16x128xf32>
    %10 = tpu.matmul %8, %9, %cst_8 {dimension_numbers = #tpu.dot_dimension_numbers<[1], [0], [0], [1], [0, 0, 1, 1], [], []>} : vector<16x128xbf16>, vector<128x128xbf16>, vector<16x128xf32> -> vector<16x128xf32>
    %c0_9 = arith.constant 0 : index
    %c0_10 = arith.constant 0 : index
    %11 = vector.load %arg5[%c0_9, %c0_10] : memref<1x128xf32, #tpu.memory_space<vmem>>, vector<1x128xf32>
    %12 = vector.broadcast %11 : vector<1x128xf32> to vector<16x128xf32>
    %13 = arith.addf %10, %12 : vector<16x128xf32>
    %c0_11 = arith.constant 0 : index
    %c0_12 = arith.constant 0 : index
    %14 = vector.load %arg6[%c0_11, %c0_12] : memref<16x128xf32, #tpu.memory_space<vmem>>, vector<16x128xf32>
    tpu.vector_store %arg6[%c0_11, %c0_12], %13 {strides = array<i32>} : memref<16x128xf32, #tpu.memory_space<vmem>>, vector<16x128xf32>,
    return
  }
  func.func @transform_0(%arg0: i32) -> (i32, i32) {
    %c0_i32 = arith.constant 0 : i32
    %c0_i32_0 = arith.constant 0 : i32
    return %arg0, %c0_i32 : i32, i32
  }
  func.func @transform_1(%arg0: i32) -> (i32, i32) {
    %c0_i32 = arith.constant 0 : i32
    %c0_i32_0 = arith.constant 0 : i32
    %c0_i32_1 = arith.constant 0 : i32
    return %c0_i32, %c0_i32_0 : i32, i32
  }
  func.func @transform_2(%arg0: i32) -> (i32, i32) {
    %c0_i32 = arith.constant 0 : i32
    %c0_i32_0 = arith.constant 0 : i32
    %c0_i32_1 = arith.constant 0 : i32
    return %c0_i32, %c0_i32_0 : i32, i32
  }
  func.func @transform_3(%arg0: i32) -> (i32, i32) {
    %c0_i32 = arith.constant 0 : i32
    %c0_i32_0 = arith.constant 0 : i32
    %c0_i32_1 = arith.constant 0 : i32
    return %c0_i32, %c0_i32_0 : i32, i32
  }
  func.func @transform_4(%arg0: i32) -> (i32, i32) {
    %c0_i32 = arith.constant 0 : i32
    %c0_i32_0 = arith.constant 0 : i32
    %c0_i32_1 = arith.constant 0 : i32
    return %c0_i32, %c0_i32_0 : i32, i32
  }
  func.func @transform_5(%arg0: i32) -> (i32, i32) {
    %c0_i32 = arith.constant 0 : i32
    %c0_i32_0 = arith.constant 0 : i32
    return %arg0, %c0_i32 : i32, i32
  }
}

</mosaic_0001>

<llo_original>
// kernel: mlp_forward.1
$region0: #{mlp_forward.1}
  #allocation0 [shape = 'u32[]', space=smem, size = 0x4, offset = 0x4, fixed_abs, tag = 'smem constant byte address 0x4 - core index']
  #allocation1 [shape = 'u32[144,128]{1,0:T(1,128)}', space=vmem, size = 0x12000, scoped, tag = 'internal scratch']
  %s0 = inlined_call_operand.vmem [shape: bf16[16,128], index: 0, kind: input, shape index: {}]
  %s1 = inlined_call_operand.hbm [shape: bf16[128,128], index: 1, kind: input, shape index: {}]
  %s2 = inlined_call_operand.vmem [shape: f32[1,128], index: 2, kind: input, shape index: {}]
  %s3 = inlined_call_operand.hbm [shape: bf16[128,128], index: 3, kind: input, shape index: {}]
  %s4 = inlined_call_operand.vmem [shape: f32[1,128], index: 4, kind: input, shape index: {}]
  %s5 = inlined_call_operand.vmem [shape: f32[16,128], index: 5, kind: output, shape index: {}]
  %s6 = sld [smem:[#allocation0]]
  $region38: #{mlp_forward.1} parent=0
    _
  %s8 = ssub.s32 1, %s6
  %s9 = scalar_select 0, %s8, %s6
  $region1: #{mlp_forward.1} parent=0
    #allocation2 [shape = 'u8[32768]{0}', space=vmem, size = 0x8000, scoped, tag = 'input window, operand 1, single buffered']
    #allocation3 [shape = 's32[1]{0}', space=sflag, size = 0x4, scoped, tag = 'scoped memory for mlp_forward.1']
    #allocation4 [shape = 'u8[32768]{0}', space=vmem, size = 0x8000, scoped, tag = 'input window, operand 3, single buffered']
    #allocation5 [shape = 's32[1]{0}', space=sflag, size = 0x4, scoped, tag = 'scoped memory for mlp_forward.1']
    %10 = vsyncpa [#allocation3], 0
    %11 = vsyncpa [#allocation5], 0
    // Predicated region
    $region2: #{mlp_forward.1} parent=1 // pred_check
      _
    $region3: #{mlp_forward.1} parent=1 // pred_check_branch
      %13 = sbr.rel (0) target = $region5
    $region4: #{mlp_forward.1} parent=1 // pred_region
      _
    $region5: #{mlp_forward.1} parent=1 // pred_fallthru
      _
    // Predicated region
    $region6: #{mlp_forward.1} parent=1 // pred_check
      _
    $region7: #{mlp_forward.1} parent=1 // pred_check_branch
      %15 = sbr.rel (0) target = $region9
    $region8: #{mlp_forward.1} parent=1 // pred_region
      %s17 = ssub.s32 1024, 1024
      %18 = vsyncadd [#allocation3], %s17
      %s19 = sshll.u32 [#allocation2], 4
      %s20 = int_to_ptr.vmem [resolvable:$true] %s19
      %25 = dma.hbm_to_vmem [thread:$0]  %s1, 1024, %s20, [#allocation3], 64, 64, 4
    $region9: #{mlp_forward.1} parent=1 // pred_fallthru
      _
    // Predicated region
    $region10: #{mlp_forward.1} parent=1 // pred_check
      _
    $region11: #{mlp_forward.1} parent=1 // pred_check_branch
      %27 = sbr.rel (0) target = $region13
    $region12: #{mlp_forward.1} parent=1 // pred_region
      _
    $region13: #{mlp_forward.1} parent=1 // pred_fallthru
      _
    // Predicated region
    $region14: #{mlp_forward.1} parent=1 // pred_check
      _
    $region15: #{mlp_forward.1} parent=1 // pred_check_branch
      %29 = sbr.rel (0) target = $region17
    $region16: #{mlp_forward.1} parent=1 // pred_region
      %s31 = ssub.s32 1024, 1024
      %32 = vsyncadd [#allocation5], %s31
      %s33 = sshll.u32 [#allocation4], 4
      %s34 = int_to_ptr.vmem [resolvable:$true] %s33
      %39 = dma.hbm_to_vmem [thread:$0]  %s3, 1024, %s34, [#allocation5], 64, 64, 4
    $region17: #{mlp_forward.1} parent=1 // pred_fallthru
      _
    // Predicated region
    $region18: #{mlp_forward.1} parent=1 // pred_check
      _
    $region19: #{mlp_forward.1} parent=1 // pred_check_branch
      %41 = sbr.rel (0) target = $region21
    $region20: #{mlp_forward.1} parent=1 // pred_region
      _
    $region21: #{mlp_forward.1} parent=1 // pred_fallthru
      _
    // Predicated region
    $region22: #{mlp_forward.1} parent=1 // pred_check
      _
    $region23: #{mlp_forward.1} parent=1 // pred_check_branch
      %43 = sbr.rel (0) target = $region25
    $region24: #{mlp_forward.1} parent=1 // pred_region
      %44 = dma.done [#allocation3], 1024
    $region25: #{mlp_forward.1} parent=1 // pred_fallthru
      _
    // Predicated region
    $region26: #{mlp_forward.1} parent=1 // pred_check
      _
    $region27: #{mlp_forward.1} parent=1 // pred_check_branch
      %46 = sbr.rel (0) target = $region29
    $region28: #{mlp_forward.1} parent=1 // pred_region
      %47 = dma.done [#allocation5], 1024
    $region29: #{mlp_forward.1} parent=1 // pred_fallthru
      _
    %v49 = vld [vmem:[%s0] sm:$0xf]
    %v50 = vld [vmem:[%s0 + $0x4] sm:$0xf]
    %v51 = vld [vmem:[#allocation2] sm:$0xf]
    %v52 = vld [vmem:[#allocation2 + $0x4] sm:$0xf]
    %v53 = vld [vmem:[#allocation2 + $0x8] sm:$0xf]
    %v54 = vld [vmem:[#allocation2 + $0xc] sm:$0xf]
    %v55 = vld [vmem:[#allocation2 + $0x10] sm:$0xf]
    %v56 = vld [vmem:[#allocation2 + $0x14] sm:$0xf]
    %v57 = vld [vmem:[#allocation2 + $0x18] sm:$0xf]
    %v58 = vld [vmem:[#allocation2 + $0x1c] sm:$0xf]
    %v59 = vld [vmem:[#allocation2 + $0x20] sm:$0xf]
    %v60 = vld [vmem:[#allocation2 + $0x24] sm:$0xf]
    %v61 = vld [vmem:[#allocation2 + $0x28] sm:$0xf]
    %v62 = vld [vmem:[#allocation2 + $0x2c] sm:$0xf]
    %v63 = vld [vmem:[#allocation2 + $0x30] sm:$0xf]
    %v64 = vld [vmem:[#allocation2 + $0x34] sm:$0xf]
    %v65 = vld [vmem:[#allocation2 + $0x38] sm:$0xf]
    %v66 = vld [vmem:[#allocation2 + $0x3c] sm:$0xf]
    %v67 = vld [vmem:[%s2] sm:$0x1]
    %v69 = vlaneseq
    %v70 = vshrl.u32 %v69, 7
    %v71 = vsub.s32 0, %v70
    %v72 = vrot.slane %v67, %v71
    %v76 = vunpack.c.l.b16 %v49
    %v77 = vunpack.c.l.b16 %v50
    %v78 = vpack.c.b16 %v77, %v76
    %v96 = vunpack.c.l.b16 %v51
    %v97 = vunpack.c.l.b16 %v52
    %v98 = vunpack.c.l.b16 %v53
    %v99 = vunpack.c.l.b16 %v54
    %v100 = vunpack.c.l.b16 %v55
    %v101 = vunpack.c.l.b16 %v56
    %v102 = vunpack.c.l.b16 %v57
    %v103 = vunpack.c.l.b16 %v58
    %v104 = vunpack.c.l.b16 %v59
    %v105 = vunpack.c.l.b16 %v60
    %v106 = vunpack.c.l.b16 %v61
    %v107 = vunpack.c.l.b16 %v62
    %v108 = vunpack.c.l.b16 %v63
    %v109 = vunpack.c.l.b16 %v64
    %v110 = vunpack.c.l.b16 %v65
    %v111 = vunpack.c.l.b16 %v66
    %v112 = vpack.c.b16 %v97, %v96
    %v113 = vpack.c.b16 %v99, %v98
    %v114 = vpack.c.b16 %v101, %v100
    %v115 = vpack.c.b16 %v103, %v102
    %v116 = vpack.c.b16 %v105, %v104
    %v117 = vpack.c.b16 %v107, %v106
    %v118 = vpack.c.b16 %v109, %v108
    %v119 = vpack.c.b16 %v111, %v110
    %128 = vmatprep.subr.bf16.mxu0 0
    %129 = vmatpush1.bf16.msra.mxu0 %v119
    %130 = vmatprep.subr.bf16.mxu0 0
    %131 = vmatpush1.bf16.msra.mxu0 %v118
    %132 = vmatprep.subr.bf16.mxu0 0
    %133 = vmatpush1.bf16.msra.mxu0 %v117
    %134 = vmatprep.subr.bf16.mxu0 0
    %135 = vmatpush1.bf16.msra.mxu0 %v116
    %136 = vmatprep.subr.bf16.mxu0 0
    %137 = vmatpush1.bf16.msra.mxu0 %v115
    %138 = vmatprep.subr.bf16.mxu0 0
    %139 = vmatpush1.bf16.msra.mxu0 %v114
    %140 = vmatprep.subr.bf16.mxu0 0
    %141 = vmatpush1.bf16.msra.mxu0 %v113
    %142 = vmatprep.subr.bf16.mxu0 0
    %143 = vmatpush1.bf16.msra.mxu0 %v112
    %144 = vmatprep.subr.bf16.mxu0 0
    %145 = vmatpush2.bf16.msra.mxu0 0
    %146 = vmatprep.subr.bf16.mxu0 0
    %147 = vmatpush2.bf16.msra.mxu0 0
    %148 = vmatprep.subr.bf16.mxu0 0
    %149 = vmatpush2.bf16.msra.mxu0 0
    %150 = vmatprep.subr.bf16.mxu0 0
    %151 = vmatpush2.bf16.msra.mxu0 0
    %152 = vmatprep.subr.bf16.mxu0 0
    %153 = vmatpush2.bf16.msra.mxu0 0
    %154 = vmatprep.subr.bf16.mxu0 0
    %155 = vmatpush2.bf16.msra.mxu0 0
    %156 = vmatprep.subr.bf16.mxu0 0
    %157 = vmatpush2.bf16.msra.mxu0 0
    %158 = vmatprep.subr.bf16.mxu0 0
    %159 = vmatpush2.bf16.msra.mxu0 0
    %160 = vmatprep.mubr.bf16.mxu0 0
    %161 = vmatmul.mubr.bf16.gmra.mxu0 %v78
    %v162 = vpop.f32.mrf.mxu0
    %v163 = vadd.f32 %v72, %v162
    %v164 = vpop.f32.mrf.mxu0
    %v165 = vpop.f32.mrf.mxu0
    %v166 = vadd.f32 %v72, %v165
    %v167 = vpop.f32.mrf.mxu0
    %168 = vdwg.mxu0
    %v169 = vmax.f32 %v163, 0.0
    %v170 = vmax.f32 %v166, 0.0
    %v171 = vpack.c.bf16 %v170, %v169
    %v172 = vld [vmem:[#allocation4] sm:$0xf]
    %v173 = vld [vmem:[#allocation4 + $0x4] sm:$0xf]
    %v174 = vld [vmem:[#allocation4 + $0x8] sm:$0xf]
    %v175 = vld [vmem:[#allocation4 + $0xc] sm:$0xf]
    %v176 = vld [vmem:[#allocation4 + $0x10] sm:$0xf]
    %v177 = vld [vmem:[#allocation4 + $0x14] sm:$0xf]
    %v178 = vld [vmem:[#allocation4 + $0x18] sm:$0xf]
    %v179 = vld [vmem:[#allocation4 + $0x1c] sm:$0xf]
    %v180 = vld [vmem:[#allocation4 + $0x20] sm:$0xf]
    %v181 = vld [vmem:[#allocation4 + $0x24] sm:$0xf]
    %v182 = vld [vmem:[#allocation4 + $0x28] sm:$0xf]
    %v183 = vld [vmem:[#allocation4 + $0x2c] sm:$0xf]
    %v184 = vld [vmem:[#allocation4 + $0x30] sm:$0xf]
    %v185 = vld [vmem:[#allocation4 + $0x34] sm:$0xf]
    %v186 = vld [vmem:[#allocation4 + $0x38] sm:$0xf]
    %v187 = vld [vmem:[#allocation4 + $0x3c] sm:$0xf]
    %v188 = vld [vmem:[%s4] sm:$0x1]
    %v190 = vlaneseq
    %v191 = vshrl.u32 %v190, 7
    %v192 = vsub.s32 0, %v191
    %v193 = vrot.slane %v188, %v192
    %v211 = vunpack.c.l.b16 %v172
    %v212 = vunpack.c.l.b16 %v173
    %v213 = vunpack.c.l.b16 %v174
    %v214 = vunpack.c.l.b16 %v175
    %v215 = vunpack.c.l.b16 %v176
    %v216 = vunpack.c.l.b16 %v177
    %v217 = vunpack.c.l.b16 %v178
    %v218 = vunpack.c.l.b16 %v179
    %v219 = vunpack.c.l.b16 %v180
    %v220 = vunpack.c.l.b16 %v181
    %v221 = vunpack.c.l.b16 %v182
    %v222 = vunpack.c.l.b16 %v183
    %v223 = vunpack.c.l.b16 %v184
    %v224 = vunpack.c.l.b16 %v185
    %v225 = vunpack.c.l.b16 %v186
    %v226 = vunpack.c.l.b16 %v187
    %v227 = vpack.c.b16 %v212, %v211
    %v228 = vpack.c.b16 %v214, %v213
    %v229 = vpack.c.b16 %v216, %v215
    %v230 = vpack.c.b16 %v218, %v217
    %v231 = vpack.c.b16 %v220, %v219
    %v232 = vpack.c.b16 %v222, %v221
    %v233 = vpack.c.b16 %v224, %v223
    %v234 = vpack.c.b16 %v226, %v225
    %243 = vmatprep.subr.bf16.mxu0 0
    %244 = vmatpush1.bf16.msra.mxu0 %v234
    %245 = vmatprep.subr.bf16.mxu0 0
    %246 = vmatpush1.bf16.msra.mxu0 %v233
    %247 = vmatprep.subr.bf16.mxu0 0
    %248 = vmatpush1.bf16.msra.mxu0 %v232
    %249 = vmatprep.subr.bf16.mxu0 0
    %250 = vmatpush1.bf16.msra.mxu0 %v231
    %251 = vmatprep.subr.bf16.mxu0 0
    %252 = vmatpush1.bf16.msra.mxu0 %v230
    %253 = vmatprep.subr.bf16.mxu0 0
    %254 = vmatpush1.bf16.msra.mxu0 %v229
    %255 = vmatprep.subr.bf16.mxu0 0
    %256 = vmatpush1.bf16.msra.mxu0 %v228
    %257 = vmatprep.subr.bf16.mxu0 0
    %258 = vmatpush1.bf16.msra.mxu0 %v227
    %259 = vmatprep.subr.bf16.mxu0 0
    %260 = vmatpush2.bf16.msra.mxu0 0
    %261 = vmatprep.subr.bf16.mxu0 0
    %262 = vmatpush2.bf16.msra.mxu0 0
    %263 = vmatprep.subr.bf16.mxu0 0
    %264 = vmatpush2.bf16.msra.mxu0 0
    %265 = vmatprep.subr.bf16.mxu0 0
    %266 = vmatpush2.bf16.msra.mxu0 0
    %267 = vmatprep.subr.bf16.mxu0 0
    %268 = vmatpush2.bf16.msra.mxu0 0
    %269 = vmatprep.subr.bf16.mxu0 0
    %270 = vmatpush2.bf16.msra.mxu0 0
    %271 = vmatprep.subr.bf16.mxu0 0
    %272 = vmatpush2.bf16.msra.mxu0 0
    %273 = vmatprep.subr.bf16.mxu0 0
    %274 = vmatpush2.bf16.msra.mxu0 0
    %275 = vmatprep.mubr.bf16.mxu0 0
    %276 = vmatmul.mubr.bf16.gmra.mxu0 %v171
    %v277 = vpop.f32.mrf.mxu0
    %v278 = vadd.f32 %v193, %v277
    %v279 = vpop.f32.mrf.mxu0
    %v280 = vpop.f32.mrf.mxu0
    %v281 = vadd.f32 %v193, %v280
    %v282 = vpop.f32.mrf.mxu0
    %283 = vdwg.mxu0
    %284 = vst [vmem:[%s5] sm:$0xff] %v278
    %285 = vst [vmem:[%s5 + $0x8] sm:$0xff] %v281
    // Predicated region
    $region30: #{mlp_forward.1} parent=1 // pred_check
      _
    $region31: #{mlp_forward.1} parent=1 // pred_check_branch
      %287 = sbr.rel (0) target = $region33
    $region32: #{mlp_forward.1} parent=1 // pred_region
      _
    $region33: #{mlp_forward.1} parent=1 // pred_fallthru
      _
    // Predicated region
    $region34: #{mlp_forward.1} parent=1 // pred_check
      _
    $region35: #{mlp_forward.1} parent=1 // pred_check_branch
      %289 = sbr.rel (0) target = $region37
    $region36: #{mlp_forward.1} parent=1 // pred_region
      _
    $region37: #{mlp_forward.1} parent=1 // pred_fallthru
      _
    %290 = vsyncpa [#allocation3], 1
    %291 = vsyncpa [#allocation5], 1

</llo_original>
